<compile_context>
chip_gen: v5e
topology: v5e:2x2
jax: 0.10.0
libtpu: 0.0.40
codegen_flags: <defaults>
</compile_context>

<pallas_src>
import functools

import jax
import jax.numpy as jnp
from jax.experimental import pallas as pl
from jax.experimental.pallas import tpu as pltpu

HIDDEN = 128          # fc1 width (fixed in the PyTorch module)
NUM_SUPPORT = 8       # quantile supports (module global `num_support`)
LANES = 128           # TPU lane width


def _round_up(n, m):
    return ((n + m - 1) // m) * m


def _qrdqn_kernel(x_ref, w1_ref, b1_ref, w2_ref, b2_ref, o_ref):
    x = x_ref[...]                                   # (TB, K) f32
    k_dim = x.shape[1]

    if k_dim <= 8:
        # Tiny contraction dim: K broadcast-FMAs on the VPU, split into two
        # independent chains (even/odd k) so the 4-wide VALU gets ILP and the
        # whole fc1 hides under the fc2 MXU work.  Keeps the MXU free for fc2.
        acc0 = x[:, 0:1] * w1_ref[0:1, :]            # (TB,1)*(1,128) -> (TB,128)
        acc1 = b1_ref[...]                           # fold bias into chain 1
        for k in range(1, k_dim):
            term = x[:, k:k + 1] * w1_ref[k:k + 1, :]
            if k % 2 == 0:
                acc0 = acc0 + term
            else:
                acc1 = acc1 + term
        h = acc0 + acc1
    else:
        h = jnp.dot(x, w1_ref[...],
                    preferred_element_type=jnp.float32) + b1_ref[...]

    h = jnp.maximum(h, 0.0)                          # ReLU on VPU

    # fc2 on the MXU; operands follow w2's dtype (bf16 by default), f32 accum.
    h = h.astype(w2_ref.dtype)
    o = jnp.dot(h, w2_ref[...],
                preferred_element_type=jnp.float32) + b2_ref[...]
    o_ref[...] = o.astype(o_ref.dtype)               # (TB, out_dim) store


@functools.partial(jax.jit,
                   static_argnames=("num_outputs", "num_support", "tb",
                                    "fc2_bf16"))
def qrdqn_forward(state, w1, b1, w2, b2, num_outputs, num_support, *,
                  tb=2048, fc2_bf16=True):
    """state: (B, num_inputs) f32 -> theta: (B, num_outputs, num_support) f32."""
    B, num_inputs = state.shape
    out_dim = num_outputs * num_support
    assert w1.shape == (num_inputs, HIDDEN)
    assert w2.shape == (HIDDEN, out_dim)

    b1_2d = b1.reshape(1, HIDDEN)
    b2_2d = b2.reshape(1, out_dim).astype(jnp.float32)
    w2_k = w2.astype(jnp.bfloat16) if fc2_bf16 else w2

    # ---- batch tile selection --------------------------------------------
    # Multiple of 8, no larger than the batch, and capped so the grid has at
    # least 2 tiles when B permits (keeps both v7x TensorCores busy; the extra
    # grid step is noise on v5e/v6e).
    if B <= 8:
        tb = B
    else:
        tb = min(tb, _round_up(B, 8))
        tb = min(tb, _round_up(pl.cdiv(B, 2), 8))
        tb = max(8, (tb // 8) * 8)
    grid = (pl.cdiv(B, tb),)

    # ---- VMEM budget (lane-padded block sizes, double-buffered) ------------
    x_tile_bytes = tb * LANES * 4                      # (tb, num_inputs) -> 128 lanes
    o_tile_bytes = tb * LANES * 4                      # (tb, out_dim)    -> 128 lanes
    w2_el_bytes = 2 if fc2_bf16 else 4
    weights_bytes = (_round_up(num_inputs, 8) * LANES * 4        # w1
                     + 8 * LANES * 4                             # b1
                     + HIDDEN * _round_up(out_dim, LANES) * w2_el_bytes  # w2
                     + 8 * LANES * 4)                            # b2
    vmem_bytes = 2 * (x_tile_bytes + o_tile_bytes) + 2 * weights_bytes + (2 << 20)
    vmem_bytes = int(max(4 << 20, min(vmem_bytes, 64 << 20)))

    flat = pl.pallas_call(
        _qrdqn_kernel,
        out_shape=jax.ShapeDtypeStruct((B, out_dim), jnp.float32),
        grid_spec=pl.GridSpec(
            grid=grid,
            in_specs=[
                pl.BlockSpec((tb, num_inputs), lambda i: (i, 0)),     # x tiled over B
                pl.BlockSpec((num_inputs, HIDDEN), lambda i: (0, 0)), # W1 resident
                pl.BlockSpec((1, HIDDEN), lambda i: (0, 0)),          # b1 resident
                pl.BlockSpec((HIDDEN, out_dim), lambda i: (0, 0)),    # W2 resident
                pl.BlockSpec((1, out_dim), lambda i: (0, 0)),         # b2 resident
            ],
            out_specs=pl.BlockSpec((tb, out_dim), lambda i: (i, 0)),
        ),
        compiler_params=pltpu.CompilerParams(
            dimension_semantics=("parallel",),      # shards batch tiles on v7x
            vmem_limit_bytes=vmem_bytes,
        ),
    )(state, w1, b1_2d, w2_k, b2_2d)

    # theta = x.view(-1, num_outputs, num_support): contiguous last-dim split,
    # a zero-cost bitcast inside this jit (no extra launch / HBM round trip).
    return flat.reshape(B, num_outputs, num_support)
    # TODO(synk): optionally fuse get_action's mean over num_support into the
    # kernel and emit Q=(B, num_outputs) alongside theta to save a launch.


def init_params(key, num_inputs, num_outputs, num_support):
    """Parameter init matching the module's shapes.

    Weights: xavier_uniform (as in the PyTorch __init__);
    Biases:  PyTorch nn.Linear default, U(-1/sqrt(fan_in), 1/sqrt(fan_in)).
    Stored as (in_features, out_features) for the kernel.
    """
    k1, k2, k3, k4 = jax.random.split(key, 4)
    out_dim = num_outputs * num_support

    def xavier(key, fan_in, fan_out):
        limit = jnp.sqrt(6.0 / (fan_in + fan_out))
        return jax.random.uniform(key, (fan_in, fan_out), jnp.float32,
                                  minval=-limit, maxval=limit)

    w1 = xavier(k1, num_inputs, HIDDEN)
    b1 = jax.random.uniform(k2, (HIDDEN,), jnp.float32,
                            minval=-1.0 / jnp.sqrt(num_inputs),
                            maxval=1.0 / jnp.sqrt(num_inputs))
    w2 = xavier(k3, HIDDEN, out_dim)
    b2 = jax.random.uniform(k4, (out_dim,), jnp.float32,
                            minval=-1.0 / jnp.sqrt(HIDDEN),
                            maxval=1.0 / jnp.sqrt(HIDDEN))
    return w1, b1, w2, b2


def _reference(state, w1, b1, w2, b2, num_outputs, num_support):
    ref = jnp.maximum(state @ w1 + b1, 0.0) @ w2 + b2
    return ref.reshape(state.shape[0], num_outputs, num_support)


if __name__ == "__main__":
    NUM_INPUTS = 4       # e.g. CartPole observation dim
    NUM_OUTPUTS = 2      # e.g. CartPole action dim

    key = jax.random.PRNGKey(0)
    kp, kx1, kx2 = jax.random.split(key, 3)
    w1, b1, w2, b2 = init_params(kp, NUM_INPUTS, NUM_OUTPUTS, NUM_SUPPORT)

    # 1) Small batch, single tile, pure-f32 fc2 path (tight tolerance).
    B = 8
    state = jax.random.normal(kx1, (B, NUM_INPUTS), jnp.float32)
    ref = _reference(state, w1, b1, w2, b2, NUM_OUTPUTS, NUM_SUPPORT)

    theta_f32 = qrdqn_forward(state, w1, b1, w2, b2, NUM_OUTPUTS, NUM_SUPPORT,
                              fc2_bf16=False)
    theta_f32 = jax.block_until_ready(theta_f32)
    assert theta_f32.shape == (B, NUM_OUTPUTS, NUM_SUPPORT)
    assert jnp.allclose(theta_f32, ref, atol=1e-5, rtol=1e-5)

    # 2) Same batch, default bf16 fc2 operands (f32 accumulate) — looser tol.
    theta_bf16 = qrdqn_forward(state, w1, b1, w2, b2, NUM_OUTPUTS, NUM_SUPPORT)
    theta_bf16 = jax.block_until_ready(theta_bf16)
    assert theta_bf16.shape == (B, NUM_OUTPUTS, NUM_SUPPORT)
    assert jnp.allclose(theta_bf16, ref, atol=3e-2, rtol=3e-2)

    # 3) Multi-tile grid with a ragged last tile (B % tb != 0): exercises the
    #    batch pipeline, the v7x >=2-tile cap, and clamped output writeback.
    B2 = 1000
    state2 = jax.random.normal(kx2, (B2, NUM_INPUTS), jnp.float32)
    theta2 = qrdqn_forward(state2, w1, b1, w2, b2, NUM_OUTPUTS, NUM_SUPPORT,
                           tb=256)
    theta2 = jax.block_until_ready(theta2)
    ref2 = _reference(state2, w1, b1, w2, b2, NUM_OUTPUTS, NUM_SUPPORT)
    assert theta2.shape == (B2, NUM_OUTPUTS, NUM_SUPPORT)
    assert jnp.allclose(theta2, ref2, atol=3e-2, rtol=3e-2)

    print("KERNEL_OK")
</pallas_src>

<mosaic_0001>
module attributes {stable_mosaic.version = 11 : i64} {
  func.func @_qrdqn_kernel(%arg0: i32, %arg1: memref<8x4xf32, #tpu.memory_space<vmem>>, %arg2: memref<4x128xf32, #tpu.memory_space<vmem>>, %arg3: memref<1x128xf32, #tpu.memory_space<vmem>>, %arg4: memref<128x16xf32, #tpu.memory_space<vmem>>, %arg5: memref<1x16xf32, #tpu.memory_space<vmem>>, %arg6: memref<8x16xf32, #tpu.memory_space<vmem>>) attributes {dimension_semantics = [#tpu.dimension_semantics<parallel>], iteration_bounds = array<i64: 1>, scalar_prefetch = 0 : i64, scratch_operands = 0 : i64, tpu.core_type = #tpu.core_type<tc>, window_params = [{transform_indices = @transform_0, window_bounds = array<i64: 8, 4>}, {pipeline_mode = #tpu.pipeline_mode<synchronous>, transform_indices = @transform_1, window_bounds = array<i64: 4, 128>}, {pipeline_mode = #tpu.pipeline_mode<synchronous>, transform_indices = @transform_2, window_bounds = array<i64: 1, 128>}, {pipeline_mode = #tpu.pipeline_mode<synchronous>, transform_indices = @transform_3, window_bounds = array<i64: 128, 16>}, {pipeline_mode = #tpu.pipeline_mode<synchronous>, transform_indices = @transform_4, window_bounds = array<i64: 1, 16>}, {transform_indices = @transform_5, window_bounds = array<i64: 8, 16>}]} {
    %c0 = arith.constant 0 : index
    %c0_0 = arith.constant 0 : index
    %0 = vector.load %arg1[%c0, %c0_0] : memref<8x4xf32, #tpu.memory_space<vmem>>, vector<8x4xf32>
    %1 = vector.extract_strided_slice %0 {offsets = [0, 0], sizes = [8, 1], strides = [1, 1]} : vector<8x4xf32> to vector<8x1xf32>
    %c0_1 = arith.constant 0 : index
    %c0_2 = arith.constant 0 : index
    %2 = vector.load %arg2[%c0_1, %c0_2] : memref<4x128xf32, #tpu.memory_space<vmem>>, vector<1x128xf32>
    %3 = vector.broadcast %1 : vector<8x1xf32> to vector<8x128xf32>
    %4 = vector.broadcast %2 : vector<1x128xf32> to vector<8x128xf32>
    %5 = arith.mulf %3, %4 : vector<8x128xf32>
    %c0_3 = arith.constant 0 : index
    %c0_4 = arith.constant 0 : index
    %6 = vector.load %arg3[%c0_3, %c0_4] : memref<1x128xf32, #tpu.memory_space<vmem>>, vector<1x128xf32>
    %7 = vector.extract_strided_slice %0 {offsets = [0, 1], sizes = [8, 1], strides = [1, 1]} : vector<8x4xf32> to vector<8x1xf32>
    %c1 = arith.constant 1 : index
    %c0_5 = arith.constant 0 : index
    %8 = vector.load %arg2[%c1, %c0_5] : memref<4x128xf32, #tpu.memory_space<vmem>>, vector<1x128xf32>
    %9 = vector.broadcast %7 : vector<8x1xf32> to vector<8x128xf32>
    %10 = vector.broadcast %8 : vector<1x128xf32> to vector<8x128xf32>
    %11 = arith.mulf %9, %10 : vector<8x128xf32>
    %12 = vector.broadcast %6 : vector<1x128xf32> to vector<8x128xf32>
    %13 = arith.addf %12, %11 : vector<8x128xf32>
    %14 = vector.extract_strided_slice %0 {offsets = [0, 2], sizes = [8, 1], strides = [1, 1]} : vector<8x4xf32> to vector<8x1xf32>
    %c2 = arith.constant 2 : index
    %c0_6 = arith.constant 0 : index
    %15 = vector.load %arg2[%c2, %c0_6] : memref<4x128xf32, #tpu.memory_space<vmem>>, vector<1x128xf32>
    %16 = vector.broadcast %14 : vector<8x1xf32> to vector<8x128xf32>
    %17 = vector.broadcast %15 : vector<1x128xf32> to vector<8x128xf32>
    %18 = arith.mulf %16, %17 : vector<8x128xf32>
    %19 = arith.addf %5, %18 : vector<8x128xf32>
    %20 = vector.extract_strided_slice %0 {offsets = [0, 3], sizes = [8, 1], strides = [1, 1]} : vector<8x4xf32> to vector<8x1xf32>
    %c3 = arith.constant 3 : index
    %c0_7 = arith.constant 0 : index
    %21 = vector.load %arg2[%c3, %c0_7] : memref<4x128xf32, #tpu.memory_space<vmem>>, vector<1x128xf32>
    %22 = vector.broadcast %20 : vector<8x1xf32> to vector<8x128xf32>
    %23 = vector.broadcast %21 : vector<1x128xf32> to vector<8x128xf32>
    %24 = arith.mulf %22, %23 : vector<8x128xf32>
    %25 = arith.addf %13, %24 : vector<8x128xf32>
    %26 = arith.addf %19, %25 : vector<8x128xf32>
    %cst = arith.constant 0.000000e+00 : f32
    %27 = vector.broadcast %cst : f32 to vector<8x128xf32>
    %28 = arith.maximumf %26, %27 : vector<8x128xf32>
    %c0_8 = arith.constant 0 : index
    %c0_9 = arith.constant 0 : index
    %29 = vector.load %arg4[%c0_8, %c0_9] : memref<128x16xf32, #tpu.memory_space<vmem>>, vector<128x16xf32>
    %cst_10 = arith.constant dense<0.000000e+00> : vector<8x16xf32>
    %30 = tpu.matmul %28, %29, %cst_10 {dimension_numbers = #tpu.dot_dimension_numbers<[1], [0], [0], [1], [0, 0, 1, 1], [], []>} : vector<8x128xf32>, vector<128x16xf32>, vector<8x16xf32> -> vector<8x16xf32>
    %c0_11 = arith.constant 0 : index
    %c0_12 = arith.constant 0 : index
    %31 = vector.load %arg5[%c0_11, %c0_12] : memref<1x16xf32, #tpu.memory_space<vmem>>, vector<1x16xf32>
    %32 = vector.broadcast %31 : vector<1x16xf32> to vector<8x16xf32>
    %33 = arith.addf %30, %32 : vector<8x16xf32>
    %c0_13 = arith.constant 0 : index
    %c0_14 = arith.constant 0 : index
    %34 = vector.load %arg6[%c0_13, %c0_14] : memref<8x16xf32, #tpu.memory_space<vmem>>, vector<8x16xf32>
    tpu.vector_store %arg6[%c0_13, %c0_14], %33 {strides = array<i32>} : memref<8x16xf32, #tpu.memory_space<vmem>>, vector<8x16xf32>,
    return
  }
  func.func @transform_0(%arg0: i32) -> (i32, i32) {
    %c0_i32 = arith.constant 0 : i32
    %c0_i32_0 = arith.constant 0 : i32
    return %arg0, %c0_i32 : i32, i32
  }
  func.func @transform_1(%arg0: i32) -> (i32, i32) {
    %c0_i32 = arith.constant 0 : i32
    %c0_i32_0 = arith.constant 0 : i32
    %c0_i32_1 = arith.constant 0 : i32
    return %c0_i32, %c0_i32_0 : i32, i32
  }
  func.func @transform_2(%arg0: i32) -> (i32, i32) {
    %c0_i32 = arith.constant 0 : i32
    %c0_i32_0 = arith.constant 0 : i32
    %c0_i32_1 = arith.constant 0 : i32
    return %c0_i32, %c0_i32_0 : i32, i32
  }
  func.func @transform_3(%arg0: i32) -> (i32, i32) {
    %c0_i32 = arith.constant 0 : i32
    %c0_i32_0 = arith.constant 0 : i32
    %c0_i32_1 = arith.constant 0 : i32
    return %c0_i32, %c0_i32_0 : i32, i32
  }
  func.func @transform_4(%arg0: i32) -> (i32, i32) {
    %c0_i32 = arith.constant 0 : i32
    %c0_i32_0 = arith.constant 0 : i32
    %c0_i32_1 = arith.constant 0 : i32
    return %c0_i32, %c0_i32_0 : i32, i32
  }
  func.func @transform_5(%arg0: i32) -> (i32, i32) {
    %c0_i32 = arith.constant 0 : i32
    %c0_i32_0 = arith.constant 0 : i32
    return %arg0, %c0_i32 : i32, i32
  }
}

</mosaic_0001>

<llo_original>
// kernel: qrdqn_forward.1
$region0: #{qrdqn_forward.1}
  #allocation0 [shape = 'u32[]', space=smem, size = 0x4, offset = 0x4, fixed_abs, tag = 'smem constant byte address 0x4 - core index']
  #allocation1 [shape = 'u32[72,128]{1,0:T(1,128)}', space=vmem, size = 0x9000, scoped, tag = 'internal scratch']
  %s0 = inlined_call_operand.vmem [shape: f32[8,4], index: 0, kind: input, shape index: {}]
  %s1 = inlined_call_operand.vmem [shape: f32[4,128], index: 1, kind: input, shape index: {}]
  %s2 = inlined_call_operand.vmem [shape: f32[1,128], index: 2, kind: input, shape index: {}]
  %s3 = inlined_call_operand.vmem [shape: f32[128,16], index: 3, kind: input, shape index: {}]
  %s4 = inlined_call_operand.vmem [shape: f32[1,16], index: 4, kind: input, shape index: {}]
  %s5 = inlined_call_operand.vmem [shape: f32[8,16], index: 5, kind: output, shape index: {}]
  %s6 = sld [smem:[#allocation0]]
  $region30: #{qrdqn_forward.1} parent=0
    _
  %s8 = ssub.s32 1, %s6
  %s9 = scalar_select 0, %s8, %s6
  // Predicated region
  $region2: #{qrdqn_forward.1} parent=0 // pred_check
    _
  $region3: #{qrdqn_forward.1} parent=0 // pred_check_branch
    %11 = sbr.rel (0) target = $region5
  $region4: #{qrdqn_forward.1} parent=0 // pred_region
    _
  $region5: #{qrdqn_forward.1} parent=0 // pred_fallthru
    _
  // Predicated region
  $region6: #{qrdqn_forward.1} parent=0 // pred_check
    _
  $region7: #{qrdqn_forward.1} parent=0 // pred_check_branch
    %13 = sbr.rel (0) target = $region9
  $region8: #{qrdqn_forward.1} parent=0 // pred_region
    _
  $region9: #{qrdqn_forward.1} parent=0 // pred_fallthru
    _
  // Predicated region
  $region10: #{qrdqn_forward.1} parent=0 // pred_check
    _
  $region11: #{qrdqn_forward.1} parent=0 // pred_check_branch
    %15 = sbr.rel (0) target = $region13
  $region12: #{qrdqn_forward.1} parent=0 // pred_region
    _
  $region13: #{qrdqn_forward.1} parent=0 // pred_fallthru
    _
  // Predicated region
  $region14: #{qrdqn_forward.1} parent=0 // pred_check
    _
  $region15: #{qrdqn_forward.1} parent=0 // pred_check_branch
    %17 = sbr.rel (0) target = $region17
  $region16: #{qrdqn_forward.1} parent=0 // pred_region
    _
  $region17: #{qrdqn_forward.1} parent=0 // pred_fallthru
    _
  // Predicated region
  $region18: #{qrdqn_forward.1} parent=0 // pred_check
    _
  $region19: #{qrdqn_forward.1} parent=0 // pred_check_branch
    %19 = sbr.rel (0) target = $region21
  $region20: #{qrdqn_forward.1} parent=0 // pred_region
    _
  $region21: #{qrdqn_forward.1} parent=0 // pred_fallthru
    _
  %v20 = vld [vmem:[%s0] sm:$0xff]
  %v21 = vld [vmem:[%s1] sm:$0x1]
  %23 = vset.pattern.permute.xlu0 0
  %24 = vperm.xlu0 %23, %v20
  %v25 = vpop.permute.xlu0 %24
  %v27 = vperm.slane %v21, 0
  %v28 = vmul.f32 %v25, %v27
  %v29 = vld [vmem:[%s2] sm:$0x1]
  %v30 = vld [vmem:[%s1 + $0x1] sm:$0x1]
  %31 = vset.pattern.permute.xlu0 1
  %32 = vperm.xlu0 %31, %v20
  %v33 = vpop.permute.xlu0 %32
  %v35 = vperm.slane %v30, 0
  %v36 = vmul.f32 %v33, %v35
  %v38 = vperm.slane %v29, 0
  %v40 = vadd.f32 %v38, %v36
  %v41 = vld [vmem:[%s1 + $0x2] sm:$0x1]
  %42 = vset.pattern.permute.xlu0 2
  %43 = vperm.xlu0 %42, %v20
  %v44 = vpop.permute.xlu0 %43
  %v46 = vperm.slane %v41, 0
  %v47 = vmul.f32 %v44, %v46
  %v48 = vadd.f32 %v28, %v47
  %v49 = vld [vmem:[%s1 + $0x3] sm:$0x1]
  %50 = vset.pattern.permute.xlu0 3
  %51 = vperm.xlu0 %50, %v20
  %v52 = vpop.permute.xlu0 %51
  %v54 = vperm.slane %v49, 0
  %v55 = vmul.f32 %v52, %v54
  %v56 = vadd.f32 %v40, %v55
  %v57 = vadd.f32 %v48, %v56
  %v58 = vmax.f32 %v57, 0.0
  %v59 = vld [vmem:[%s3] sm:$0xff]
  %v60 = vld [vmem:[%s3 + $0x8] sm:$0xff]
  %v61 = vld [vmem:[%s3 + $0x10] sm:$0xff]
  %v62 = vld [vmem:[%s3 + $0x18] sm:$0xff]
  %v63 = vld [vmem:[%s3 + $0x20] sm:$0xff]
  %v64 = vld [vmem:[%s3 + $0x28] sm:$0xff]
  %v65 = vld [vmem:[%s3 + $0x30] sm:$0xff]
  %v66 = vld [vmem:[%s3 + $0x38] sm:$0xff]
  %v67 = vld [vmem:[%s3 + $0x40] sm:$0xff]
  %v68 = vld [vmem:[%s3 + $0x48] sm:$0xff]
  %v69 = vld [vmem:[%s3 + $0x50] sm:$0xff]
  %v70 = vld [vmem:[%s3 + $0x58] sm:$0xff]
  %v71 = vld [vmem:[%s3 + $0x60] sm:$0xff]
  %v72 = vld [vmem:[%s3 + $0x68] sm:$0xff]
  %v73 = vld [vmem:[%s3 + $0x70] sm:$0xff]
  %v74 = vld [vmem:[%s3 + $0x78] sm:$0xff]
  %v75 = vld [vmem:[%s4] sm:$0x1]
  %v77 = vperm.slane %v75, 0
  %79 = vmatpush.msra.mxu0 %v74
  %80 = vmatpush.msra.mxu0 %v73
  %81 = vmatpush.msra.mxu0 %v72
  %82 = vmatpush.msra.mxu0 %v71
  %83 = vmatpush.msra.mxu0 %v70
  %84 = vmatpush.msra.mxu0 %v69
  %85 = vmatpush.msra.mxu0 %v68
  %86 = vmatpush.msra.mxu0 %v67
  %87 = vmatpush.msra.mxu0 %v66
  %88 = vmatpush.msra.mxu0 %v65
  %89 = vmatpush.msra.mxu0 %v64
  %90 = vmatpush.msra.mxu0 %v63
  %91 = vmatpush.msra.mxu0 %v62
  %92 = vmatpush.msra.mxu0 %v61
  %93 = vmatpush.msra.mxu0 %v60
  %94 = vmatpush.msra.mxu0 %v59
  %95 = vmatmul.f32.gmra.mxu0 %v58
  %v96 = vpop.f32.mrf.mxu0
  %v97 = vadd.f32 %v77, %v96
  %98 = vdwg.mxu0
  %vm99 = vcmask 130048
  %100 = vst.msk [vmem:[%s5] sm:$0xff] %vm99, %v97
  // Predicated region
  $region22: #{qrdqn_forward.1} parent=0 // pred_check
    _
  $region23: #{qrdqn_forward.1} parent=0 // pred_check_branch
    %102 = sbr.rel (0) target = $region25
  $region24: #{qrdqn_forward.1} parent=0 // pred_region
    _
  $region25: #{qrdqn_forward.1} parent=0 // pred_fallthru
    _
  // Predicated region
  $region26: #{qrdqn_forward.1} parent=0 // pred_check
    _
  $region27: #{qrdqn_forward.1} parent=0 // pred_check_branch
    %104 = sbr.rel (0) target = $region29
  $region28: #{qrdqn_forward.1} parent=0 // pred_region
    _
  $region29: #{qrdqn_forward.1} parent=0 // pred_fallthru
    _

</llo_original>
